<compile_context>
chip_gen: v6e
topology: v6e:2x2x1
jax: 0.10.0
libtpu: 0.0.40
codegen_flags: <defaults>
</compile_context>

<pallas_src>
import functools
import math

import jax
import jax.numpy as jnp
from jax.experimental import pallas as pl
from jax.experimental.pallas import tpu as pltpu

_EPS = 1e-12                  # torch F.normalize default eps (clamps the norm)
_INV_EPS = 1.0 / _EPS
_LANES = 128
_TARGET_TILE_BYTES = 2 * 1024 * 1024    # per double-buffered pipeline buffer


def _cdiv(a, b):
    return -(-a // b)


def _round_up(a, b):
    return _cdiv(a, b) * b


def _l2norm_kernel(x_ref, o_ref):
    """Fallback path: normalized dim D on the lane axis, reduce along lanes."""
    x = x_ref[...].astype(jnp.float32)
    ssq = jnp.sum(x * x, axis=-1, keepdims=True)
    inv = jnp.minimum(jax.lax.rsqrt(ssq), _INV_EPS)      # == 1 / max(norm, eps)
    o_ref[...] = (x * inv).astype(o_ref.dtype)


def _l2norm_grouped_kernel(x_ref, a_ref, at_ref, o_ref):
    """Lane-dense path: each 128-wide lane row packs G rows of length D.

    Per-group sum-of-squares ((tm,L)@(L,G)) and the broadcast of the per-group
    scale back to its D lanes ((tm,G)@(G,L)) use tiny MXU matmuls against the
    0/1 group-indicator matrix; precision=HIGHEST keeps f32 accuracy.
    """
    x = x_ref[...].astype(jnp.float32)                   # (tm, L), L = G*D
    sq = x * x
    ssq = jnp.dot(sq, a_ref[...],                        # (tm, G)
                  precision=jax.lax.Precision.HIGHEST,
                  preferred_element_type=jnp.float32)
    inv = jnp.minimum(jax.lax.rsqrt(ssq), _INV_EPS)      # == 1 / max(norm, eps)
    scale = jnp.dot(inv, at_ref[...],                    # (tm, L)
                    precision=jax.lax.Precision.HIGHEST,
                    preferred_element_type=jnp.float32)
    o_ref[...] = (x * scale).astype(o_ref.dtype)


def _sublane_multiple(dtype):
    return {4: 8, 2: 16, 1: 32}.get(jnp.dtype(dtype).itemsize, 8)


def _choose_tile_rows(num_rows, row_bytes_vmem, sublane):
    """Largest row tile (multiple of `sublane`) targeting ~2 MiB per buffer."""
    tile = (_TARGET_TILE_BYTES // max(row_bytes_vmem, 1)) // sublane * sublane
    tile = max(sublane, min(tile, 4096))
    if tile >= num_rows:
        if num_rows >= 2 * sublane:
            # keep >= 2 grid steps so both v7x TensorCores get work
            tile = _round_up(_cdiv(num_rows, 2), sublane)
        else:
            tile = num_rows
    return int(tile)


_COMPILER_PARAMS = pltpu.CompilerParams(
    dimension_semantics=("parallel",),
    vmem_limit_bytes=32 * 1024 * 1024,
)


@functools.partial(jax.jit, static_argnames=("normalized_shape",))
def l2_normalization(x, *, normalized_shape):
    """Equivalent of L2NormalizationLayer(normalized_shape)(x)."""
    # torch: torch.where(shape == normalized_shape)[0][-1]  -> LAST matching axis
    matching = [i for i, s in enumerate(x.shape) if s == normalized_shape]
    if not matching:
        raise ValueError("no axis matches normalized_shape")
    dim = matching[-1]

    # Fast path: normalized axis already last -> no transpose / extra HBM pass.
    # TODO(synk): for a non-last normalized axis, reduce along sublanes in-kernel
    # instead of paying the wrapper-side moveaxis (one extra HBM read+write).
    if dim != x.ndim - 1:
        x_moved = jnp.moveaxis(x, dim, -1)
    else:
        x_moved = x
    moved_shape = x_moved.shape
    D = moved_shape[-1]
    M = math.prod(moved_shape[:-1])

    itemsize = jnp.dtype(x.dtype).itemsize
    sublane = _sublane_multiple(x.dtype)

    # Lane-dense grouped path when G = 128 // D whole rows pack into 128 lanes.
    use_grouped = (D < _LANES) and (_LANES % D == 0) and (M % (_LANES // D) == 0)

    if use_grouped:
        G = _LANES // D
        L = _LANES
        Mg = M // G
        x_slab = x_moved.reshape(Mg, L)
        groups = jnp.arange(L) // D
        a_mat = (groups[:, None] == jnp.arange(G)[None, :]).astype(jnp.float32)  # (L, G)
        at_mat = a_mat.T                                                          # (G, L)

        tile = _choose_tile_rows(Mg, L * itemsize, sublane)
        out_slab = pl.pallas_call(
            _l2norm_grouped_kernel,
            out_shape=jax.ShapeDtypeStruct((Mg, L), x.dtype),
            grid_spec=pltpu.PrefetchScalarGridSpec(
                num_scalar_prefetch=0,
                grid=(_cdiv(Mg, tile),),
                in_specs=[
                    pl.BlockSpec((tile, L), lambda i: (i, 0)),
                    pl.BlockSpec((L, G), lambda i: (0, 0)),   # constant block: not re-DMA'd
                    pl.BlockSpec((G, L), lambda i: (0, 0)),
                ],
                out_specs=pl.BlockSpec((tile, L), lambda i: (i, 0)),
            ),
            compiler_params=_COMPILER_PARAMS,
        )(x_slab, a_mat, at_mat)
    else:
        # TODO(synk): add a D-blocked (two-pass, VMEM-scratch accumulate) path
        # for extremely large D that would not fit a single (tile, D) block.
        x_slab = x_moved.reshape(M, D)
        row_bytes_vmem = _round_up(D, _LANES) * itemsize   # VMEM pads lanes to 128
        tile = _choose_tile_rows(M, row_bytes_vmem, sublane)
        out_slab = pl.pallas_call(
            _l2norm_kernel,
            out_shape=jax.ShapeDtypeStruct((M, D), x.dtype),
            grid_spec=pltpu.PrefetchScalarGridSpec(
                num_scalar_prefetch=0,
                grid=(_cdiv(M, tile),),
                in_specs=[pl.BlockSpec((tile, D), lambda i: (i, 0))],
                out_specs=pl.BlockSpec((tile, D), lambda i: (i, 0)),
            ),
            compiler_params=_COMPILER_PARAMS,
        )(x_slab)

    out = out_slab.reshape(moved_shape)
    if dim != x.ndim - 1:
        out = jnp.moveaxis(out, -1, dim)
    return out


def _reference(x, normalized_shape):
    matching = [i for i, s in enumerate(x.shape) if s == normalized_shape]
    dim = matching[-1]
    norm = jnp.sqrt(jnp.sum(x.astype(jnp.float32) ** 2, axis=dim, keepdims=True))
    return (x / jnp.maximum(norm, _EPS)).astype(x.dtype)


if __name__ == "__main__":
    key = jax.random.PRNGKey(0)

    # Primary example: NCHW-style input; normalized_shape=16 matches both H and
    # W -> torch (and this kernel) picks the LAST matching axis (W, dim=3).
    x = jax.random.normal(key, (2, 4, 16, 16), dtype=jnp.float32)
    out = jax.block_until_ready(l2_normalization(x, normalized_shape=16))
    ref = _reference(x, 16)
    assert out.shape == x.shape and out.dtype == x.dtype
    assert jnp.allclose(out, ref, atol=1e-5, rtol=1e-5)

    # Ragged last grid block on the lane-dense path (rows % tile != 0, no pad).
    x2 = jax.random.normal(key, (2, 5, 16, 16), dtype=jnp.float32)
    o2 = jax.block_until_ready(l2_normalization(x2, normalized_shape=16))
    assert jnp.allclose(o2, _reference(x2, 16), atol=1e-5, rtol=1e-5)

    # Normalized axis not last (exercises the moveaxis path).
    x3 = jax.random.normal(key, (4, 16, 32), dtype=jnp.float32)
    o3 = jax.block_until_ready(l2_normalization(x3, normalized_shape=16))
    assert jnp.allclose(o3, _reference(x3, 16), atol=1e-5, rtol=1e-5)

    # D that does not divide 128 (exercises the ungrouped fallback kernel).
    x4 = jax.random.normal(key, (3, 5, 48), dtype=jnp.float32)
    o4 = jax.block_until_ready(l2_normalization(x4, normalized_shape=48))
    assert jnp.allclose(o4, _reference(x4, 48), atol=1e-5, rtol=1e-5)

    print("KERNEL_OK")
</pallas_src>

<mosaic_0001>
module attributes {stable_mosaic.version = 11 : i64} {
  func.func @_l2norm_grouped_kernel(%arg0: i32, %arg1: memref<8x128xf32, #tpu.memory_space<vmem>>, %arg2: memref<128x8xf32, #tpu.memory_space<vmem>>, %arg3: memref<8x128xf32, #tpu.memory_space<vmem>>, %arg4: memref<8x128xf32, #tpu.memory_space<vmem>>) attributes {dimension_semantics = [#tpu.dimension_semantics<parallel>], iteration_bounds = array<i64: 2>, scalar_prefetch = 0 : i64, scratch_operands = 0 : i64, tpu.core_type = #tpu.core_type<tc>, window_params = [{transform_indices = @transform_0, window_bounds = array<i64: 8, 128>}, {pipeline_mode = #tpu.pipeline_mode<synchronous>, transform_indices = @transform_1, window_bounds = array<i64: 128, 8>}, {pipeline_mode = #tpu.pipeline_mode<synchronous>, transform_indices = @transform_2, window_bounds = array<i64: 8, 128>}, {transform_indices = @transform_3, window_bounds = array<i64: 8, 128>}]} {
    %c0 = arith.constant 0 : index
    %c0_0 = arith.constant 0 : index
    %0 = vector.load %arg1[%c0, %c0_0] : memref<8x128xf32, #tpu.memory_space<vmem>>, vector<8x128xf32>
    %1 = arith.mulf %0, %0 : vector<8x128xf32>
    %c0_1 = arith.constant 0 : index
    %c0_2 = arith.constant 0 : index
    %2 = vector.load %arg2[%c0_1, %c0_2] : memref<128x8xf32, #tpu.memory_space<vmem>>, vector<128x8xf32>
    %cst = arith.constant dense<0.000000e+00> : vector<8x8xf32>
    %3 = tpu.matmul %1, %2, %cst {dimension_numbers = #tpu.dot_dimension_numbers<[1], [0], [0], [1], [0, 0, 1, 1], [], []>, precision = #tpu.contract_precision<fp32>} : vector<8x128xf32>, vector<128x8xf32>, vector<8x8xf32> -> vector<8x8xf32>
    %4 = math.rsqrt %3 : vector<8x8xf32>
    %cst_3 = arith.constant 9.99999995E+11 : f32
    %5 = vector.broadcast %cst_3 : f32 to vector<8x8xf32>
    %6 = arith.minimumf %4, %5 : vector<8x8xf32>
    %c0_4 = arith.constant 0 : index
    %c0_5 = arith.constant 0 : index
    %7 = vector.load %arg3[%c0_4, %c0_5] : memref<8x128xf32, #tpu.memory_space<vmem>>, vector<8x128xf32>
    %cst_6 = arith.constant dense<0.000000e+00> : vector<8x128xf32>
    %8 = tpu.matmul %6, %7, %cst_6 {dimension_numbers = #tpu.dot_dimension_numbers<[1], [0], [0], [1], [0, 0, 1, 1], [], []>, precision = #tpu.contract_precision<fp32>} : vector<8x8xf32>, vector<8x128xf32>, vector<8x128xf32> -> vector<8x128xf32>
    %9 = arith.mulf %0, %8 : vector<8x128xf32>
    %c0_7 = arith.constant 0 : index
    %c0_8 = arith.constant 0 : index
    %10 = vector.load %arg4[%c0_7, %c0_8] : memref<8x128xf32, #tpu.memory_space<vmem>>, vector<8x128xf32>
    tpu.vector_store %arg4[%c0_7, %c0_8], %9 {strides = array<i32>} : memref<8x128xf32, #tpu.memory_space<vmem>>, vector<8x128xf32>,
    return
  }
  func.func @transform_0(%arg0: i32) -> (i32, i32) {
    %c0_i32 = arith.constant 0 : i32
    %c0_i32_0 = arith.constant 0 : i32
    return %arg0, %c0_i32 : i32, i32
  }
  func.func @transform_1(%arg0: i32) -> (i32, i32) {
    %c0_i32 = arith.constant 0 : i32
    %c0_i32_0 = arith.constant 0 : i32
    %c0_i32_1 = arith.constant 0 : i32
    return %c0_i32, %c0_i32_0 : i32, i32
  }
  func.func @transform_2(%arg0: i32) -> (i32, i32) {
    %c0_i32 = arith.constant 0 : i32
    %c0_i32_0 = arith.constant 0 : i32
    %c0_i32_1 = arith.constant 0 : i32
    return %c0_i32, %c0_i32_0 : i32, i32
  }
  func.func @transform_3(%arg0: i32) -> (i32, i32) {
    %c0_i32 = arith.constant 0 : i32
    %c0_i32_0 = arith.constant 0 : i32
    return %arg0, %c0_i32 : i32, i32
  }
}

</mosaic_0001>

<llo_original>
// kernel: l2_normalization.1
$region0: #{l2_normalization.1}
  #allocation0 [shape = 'u32[]', space=smem, size = 0x4, offset = 0x4, fixed_abs, tag = 'smem constant byte address 0x4 - core index']
  #allocation1 [shape = 'u32[144,128]{1,0:T(1,128)}', space=vmem, size = 0x12000, scoped, tag = 'internal scratch']
  %s0 = inlined_call_operand.vmem [shape: f32[16,128], index: 0, kind: input, shape index: {}]
  %s1 = inlined_call_operand.vmem [shape: f32[128,8], index: 1, kind: input, shape index: {}]
  %s2 = inlined_call_operand.vmem [shape: f32[8,128], index: 2, kind: input, shape index: {}]
  %s3 = inlined_call_operand.vmem [shape: f32[16,128], index: 3, kind: output, shape index: {}]
  %s4 = sld [smem:[#allocation0]]
  $region45: #{l2_normalization.1} parent=0
    _
  %s6 = ssub.s32 1, %s4
  %s7 = scalar_select 0, %s6, %s4
  loop: start=0, step=1, limit=4
  $region2: #{l2_normalization.1} parent=0 // loop_pre_header
    _
  $region3: #{l2_normalization.1} parent=0 // loop_header
    %s9 = sphi 0, %s13
    %p10 = scmp.ge.s32.totalorder %s9, 4
    %s19 = sphi 0, %s21
    %s22 = sphi 0, %s19
    %s23 = sphi 0, %s22
    %s39 = sphi 0, %s23
    %s43 = sphi 0, %s43
    %s45 = sphi 0, %s43
    %s46 = sphi 0, %s45
    %s60 = sphi 0, %s46
    %s64 = sphi 0, %s64
    %s66 = sphi 0, %s64
    %s67 = sphi 0, %s66
    %s81 = sphi 0, %s67
    %s87 = sphi 0, %s89
    %s90 = sphi 0, %s87
    %s91 = sphi 0, %s90
    %s107 = sphi 0, %s91
  $region4: #{l2_normalization.1} parent=0 // loop_header_branch
    %12 = sbr.rel (%p10) target = $region8
  $region5: #{l2_normalization.1} parent=0 // loop_body
    %s14 = ssub.s32 %s9, 1
    %s15 = ssub.s32 %s9, 2
    %s16 = sadd.s32 %s9, 1
    %s17 = ssub.s32 %s9, %s16
    %p18 = scmp.eq.s32.totalorder %s17, 0
    %s20 = sadd.s32 %s19, 1
    %s21 = scalar_select %p18, %s19, %s20
    %p24 = pneg %p18
    %p25 = scmp.eq.s32.totalorder %s9, 1
    %p26 = por %p24, %p25
    %p27 = scmp.ne.s32.totalorder %s19, %s22
    %p28 = scmp.eq.s32.totalorder %s9, 0
    %p29 = por %p27, %p28
    %p30 = scmp.ne.s32.totalorder %s19, %s22
    %p31 = scmp.eq.s32.totalorder %s14, 1
    %p32 = por %p30, %p31
    %p33 = scmp.ne.s32.totalorder %s22, %s23
    %p34 = scmp.eq.s32.totalorder %s14, 0
    %p35 = por %p33, %p34
    %p36 = scmp.ne.s32.totalorder %s22, %s23
    %p37 = scmp.eq.s32.totalorder %s15, 1
    %p38 = por %p36, %p37
    %p40 = scmp.ne.s32.totalorder %s23, %s39
    %p41 = scmp.eq.s32.totalorder %s15, 0
    %p42 = por %p40, %p41
    %s44 = sadd.s32 %s43, 1
    %p47 = scmp.eq.s32.totalorder %s9, 1
    %p48 = scmp.ne.s32.totalorder %s43, %s45
    %p49 = scmp.eq.s32.totalorder %s9, 0
    %p50 = por %p48, %p49
    %p51 = scmp.ne.s32.totalorder %s43, %s45
    %p52 = scmp.eq.s32.totalorder %s14, 1
    %p53 = por %p51, %p52
    %p54 = scmp.ne.s32.totalorder %s45, %s46
    %p55 = scmp.eq.s32.totalorder %s14, 0
    %p56 = por %p54, %p55
    %p57 = scmp.ne.s32.totalorder %s45, %s46
    %p58 = scmp.eq.s32.totalorder %s15, 1
    %p59 = por %p57, %p58
    %p61 = scmp.ne.s32.totalorder %s46, %s60
    %p62 = scmp.eq.s32.totalorder %s15, 0
    %p63 = por %p61, %p62
    %s65 = sadd.s32 %s64, 1
    %p68 = scmp.eq.s32.totalorder %s9, 1
    %p69 = scmp.ne.s32.totalorder %s64, %s66
    %p70 = scmp.eq.s32.totalorder %s9, 0
    %p71 = por %p69, %p70
    %p72 = scmp.ne.s32.totalorder %s64, %s66
    %p73 = scmp.eq.s32.totalorder %s14, 1
    %p74 = por %p72, %p73
    %p75 = scmp.ne.s32.totalorder %s66, %s67
    %p76 = scmp.eq.s32.totalorder %s14, 0
    %p77 = por %p75, %p76
    %p78 = scmp.ne.s32.totalorder %s66, %s67
    %p79 = scmp.eq.s32.totalorder %s15, 1
    %p80 = por %p78, %p79
    %p82 = scmp.ne.s32.totalorder %s67, %s81
    %p83 = scmp.eq.s32.totalorder %s15, 0
    %p84 = por %p82, %p83
    %s85 = ssub.s32 %s9, %s16
    %p86 = scmp.eq.s32.totalorder %s85, 0
    %s88 = sadd.s32 %s87, 1
    %s89 = scalar_select %p86, %s87, %s88
    %p92 = pneg %p86
    %p93 = scmp.eq.s32.totalorder %s9, 1
    %p94 = por %p92, %p93
    %p95 = scmp.ne.s32.totalorder %s87, %s90
    %p96 = scmp.eq.s32.totalorder %s9, 0
    %p97 = por %p95, %p96
    %p98 = scmp.ne.s32.totalorder %s87, %s90
    %p99 = scmp.eq.s32.totalorder %s14, 1
    %p100 = por %p98, %p99
    %p101 = scmp.ne.s32.totalorder %s90, %s91
    %p102 = scmp.eq.s32.totalorder %s14, 0
    %p103 = por %p101, %p102
    %p104 = scmp.ne.s32.totalorder %s90, %s91
    %p105 = scmp.eq.s32.totalorder %s15, 1
    %p106 = por %p104, %p105
    %p108 = scmp.ne.s32.totalorder %s91, %s107
    %p109 = scmp.eq.s32.totalorder %s15, 0
    %p110 = por %p108, %p109
    %p111 = scmp.le.s32.totalorder 1, %s9
    %p112 = scmp.lt.s32.totalorder %s9, 3
    %p113 = pnand %p111, %p112
    %p114 = pneg %p113
    // Predicated region
    $region9: #{l2_normalization.1} parent=5 // pred_check
      _
    $region10: #{l2_normalization.1} parent=5 // pred_check_branch
      %116 = sbr.rel (%p113) target = $region12
    $region11: #{l2_normalization.1} parent=5 // pred_region
      %s117 = ssub.s32 %s9, 1
      // Predicated region
      $region13: #{l2_normalization.1} parent=11 // pred_check
        %p118 = pneg %p56
      $region14: #{l2_normalization.1} parent=11 // pred_check_branch
        %120 = sbr.rel (%p118) target = $region16
      $region15: #{l2_normalization.1} parent=11 // pred_region
        _
      $region16: #{l2_normalization.1} parent=11 // pred_fallthru
        _
      // Predicated region
      $region17: #{l2_normalization.1} parent=11 // pred_check
        %p121 = pneg %p77
      $region18: #{l2_normalization.1} parent=11 // pred_check_branch
        %123 = sbr.rel (%p121) target = $region20
      $region19: #{l2_normalization.1} parent=11 // pred_region
        _
      $region20: #{l2_normalization.1} parent=11 // pred_fallthru
        _
    $region12: #{l2_normalization.1} parent=5 // pred_fallthru
      _
    %p124 = scmp.lt.s32.totalorder %s9, 2
    // Predicated region
    $region21: #{l2_normalization.1} parent=5 // pred_check
      %p125 = pneg %p124
    $region22: #{l2_normalization.1} parent=5 // pred_check_branch
      %127 = sbr.rel (%p125) target = $region24
    $region23: #{l2_normalization.1} parent=5 // pred_region
      // Predicated region
      $region25: #{l2_normalization.1} parent=23 // pred_check
        %p128 = pneg %p29
      $region26: #{l2_normalization.1} parent=23 // pred_check_branch
        %130 = sbr.rel (%p128) target = $region28
      $region27: #{l2_normalization.1} parent=23 // pred_region
        %p131 = scmp.lt.s32.totalorder %s9, 1
        %s132 = scalar_select %p131, %s9, 1
        %s133 = smul.addr %s132, 8
        %s134 = scalar_lea.vmem %s0, %s133
      $region28: #{l2_normalization.1} parent=23 // pred_fallthru
        _
    $region24: #{l2_normalization.1} parent=5 // pred_fallthru
      _
    %p135 = scmp.le.s32.totalorder 1, %s9
    %p136 = scmp.lt.s32.totalorder %s9, 3
    %p137 = pnand %p135, %p136
    %p138 = pneg %p137
    // Predicated region
    $region29: #{l2_normalization.1} parent=5 // pred_check
      _
    $region30: #{l2_normalization.1} parent=5 // pred_check_branch
      %140 = sbr.rel (%p137) target = $region32
    $region31: #{l2_normalization.1} parent=5 // pred_region
      %s141 = ssub.s32 %s9, 1
      %p142 = scmp.lt.s32.totalorder %s14, 1
      %s143 = scalar_select %p142, %s14, 1
      %s144 = smul.addr %s143, 8
      %s145 = scalar_lea.vmem %s0, %s144
      %p146 = pneg %p35
      %p147 = pneg %p32
      %p148 = pneg %p56
      %p149 = pneg %p53
      %p150 = pneg %p77
      %p151 = pneg %p74
      %p152 = pneg %p103
      %p153 = pneg %p100
      %p154 = scmp.lt.s32.totalorder %s14, 1
      %s155 = scalar_select %p154, %s14, 1
      %s156 = smul.addr %s155, 8
      %s157 = scalar_lea.vmem %s3, %s156
      %p158 = scmp.lt.s32.totalorder %s14, 1
      %s159 = scalar_select %p158, %s14, 1
      %s160 = smul.addr %s159, 8
      %s161 = scalar_lea.vmem %s0, %s160
      %p162 = scmp.lt.s32.totalorder %s14, 1
      %s163 = scalar_select %p162, %s14, 1
      %s164 = smul.addr %s163, 8
      %s165 = scalar_lea.vmem %s3, %s164
      %v166 = vld [vmem:[%s161] sm:$0xff]
      %v167 = vmul.f32 %v166, %v166
      %v168 = vld [vmem:[%s1] sm:$0xff]
      %v169 = vld [vmem:[%s1 + $0x8] sm:$0xff]
      %v170 = vld [vmem:[%s1 + $0x10] sm:$0xff]
      %v171 = vld [vmem:[%s1 + $0x18] sm:$0xff]
      %v172 = vld [vmem:[%s1 + $0x20] sm:$0xff]
      %v173 = vld [vmem:[%s1 + $0x28] sm:$0xff]
      %v174 = vld [vmem:[%s1 + $0x30] sm:$0xff]
      %v175 = vld [vmem:[%s1 + $0x38] sm:$0xff]
      %v176 = vld [vmem:[%s1 + $0x40] sm:$0xff]
      %v177 = vld [vmem:[%s1 + $0x48] sm:$0xff]
      %v178 = vld [vmem:[%s1 + $0x50] sm:$0xff]
      %v179 = vld [vmem:[%s1 + $0x58] sm:$0xff]
      %v180 = vld [vmem:[%s1 + $0x60] sm:$0xff]
      %v181 = vld [vmem:[%s1 + $0x68] sm:$0xff]
      %v182 = vld [vmem:[%s1 + $0x70] sm:$0xff]
      %v183 = vld [vmem:[%s1 + $0x78] sm:$0xff]
      %184 = vmatprep.subr.mxu0 0.0
      %v185 = vand.u32 %v183, 4294901760
      %186 = vmatpush1.msra.mxu0 %v185
      %187 = vmatprep.subr.mxu0 0.0
      %v188 = vand.u32 %v182, 4294901760
      %189 = vmatpush1.msra.mxu0 %v188
      %190 = vmatprep.subr.mxu0 0.0
      %v191 = vand.u32 %v181, 4294901760
      %192 = vmatpush1.msra.mxu0 %v191
      %193 = vmatprep.subr.mxu0 0.0
      %v194 = vand.u32 %v180, 4294901760
      %195 = vmatpush1.msra.mxu0 %v194
      %196 = vmatprep.subr.mxu0 0.0
      %v197 = vand.u32 %v179, 4294901760
      %198 = vmatpush1.msra.mxu0 %v197
      %199 = vmatprep.subr.mxu0 0.0
      %v200 = vand.u32 %v178, 4294901760
      %201 = vmatpush1.msra.mxu0 %v200
      %202 = vmatprep.subr.mxu0 0.0
      %v203 = vand.u32 %v177, 4294901760
      %204 = vmatpush1.msra.mxu0 %v203
      %205 = vmatprep.subr.mxu0 0.0
      %v206 = vand.u32 %v176, 4294901760
      %207 = vmatpush1.msra.mxu0 %v206
      %208 = vmatprep.subr.mxu0 0.0
      %v209 = vand.u32 %v175, 4294901760
      %210 = vmatpush1.msra.mxu0 %v209
      %211 = vmatprep.subr.mxu0 0.0
      %v212 = vand.u32 %v174, 4294901760
      %213 = vmatpush1.msra.mxu0 %v212
      %214 = vmatprep.subr.mxu0 0.0
      %v215 = vand.u32 %v173, 4294901760
      %216 = vmatpush1.msra.mxu0 %v215
      %217 = vmatprep.subr.mxu0 0.0
      %v218 = vand.u32 %v172, 4294901760
      %219 = vmatpush1.msra.mxu0 %v218
      %220 = vmatprep.subr.mxu0 0.0
      %v221 = vand.u32 %v171, 4294901760
      %222 = vmatpush1.msra.mxu0 %v221
      %223 = vmatprep.subr.mxu0 0.0
      %v224 = vand.u32 %v170, 4294901760
      %225 = vmatpush1.msra.mxu0 %v224
      %226 = vmatprep.subr.mxu0 0.0
      %v227 = vand.u32 %v169, 4294901760
      %228 = vmatpush1.msra.mxu0 %v227
      %229 = vmatprep.subr.mxu0 0.0
      %v230 = vand.u32 %v168, 4294901760
      %231 = vmatpush1.msra.mxu0 %v230
      %232 = vmatprep.subr.mxu0 0.0
      %233 = vmatpush2.msra.mxu0 0.0
      %234 = vmatprep.subr.mxu0 0.0
      %235 = vmatpush2.msra.mxu0 0.0
      %236 = vmatprep.subr.mxu0 0.0
      %237 = vmatpush2.msra.mxu0 0.0
      %238 = vmatprep.subr.mxu0 0.0
      %239 = vmatpush2.msra.mxu0 0.0
      %240 = vmatprep.subr.mxu0 0.0
      %241 = vmatpush2.msra.mxu0 0.0
      %242 = vmatprep.subr.mxu0 0.0
      %243 = vmatpush2.msra.mxu0 0.0
      %244 = vmatprep.subr.mxu0 0.0
      %245 = vmatpush2.msra.mxu0 0.0
      %246 = vmatprep.subr.mxu0 0.0
      %247 = vmatpush2.msra.mxu0 0.0
      %248 = vmatprep.subr.mxu0 0.0
      %249 = vmatpush2.msra.mxu0 0.0
      %250 = vmatprep.subr.mxu0 0.0
      %251 = vmatpush2.msra.mxu0 0.0
      %252 = vmatprep.subr.mxu0 0.0
      %253 = vmatpush2.msra.mxu0 0.0
      %254 = vmatprep.subr.mxu0 0.0
      %255 = vmatpush2.msra.mxu0 0.0
      %256 = vmatprep.subr.mxu0 0.0
      %257 = vmatpush2.msra.mxu0 0.0
      %258 = vmatprep.subr.mxu0 0.0
      %259 = vmatpush2.msra.mxu0 0.0
      %260 = vmatprep.subr.mxu0 0.0
      %261 = vmatpush2.msra.mxu0 0.0
      %262 = vmatprep.subr.mxu0 0.0
      %263 = vmatpush2.msra.mxu0 0.0
      %264 = vmatprep.mubr.f32.mxu0 0.0
      %v265 = vand.u32 %v167, 4294901760
      %v266 = vsub.f32 %v167, %v265
      %v267 = vand.u32 %v266, 4294901760
      %v268 = vsub.f32 %v266, %v267
      %v269 = vand.u32 %v268, 4294901760
      %270 = vmatmul.mubr.f32.gmra.mxu0 %v269
      %v271 = vpop.f32.mrf.mxu0
      %v272 = vadd.f32 0.0, %v271
      %v273 = vpop.f32.mrf.mxu0
      %274 = vdwg.mxu0
      %275 = vmatprep.subr.mxu0 0.0
      %v276 = vand.u32 %v183, 4294901760
      %v277 = vsub.f32 %v183, %v276
      %v278 = vand.u32 %v277, 4294901760
      %v279 = vsub.f32 %v277, %v278
      %v280 = vand.u32 %v279, 4294901760
      %281 = vmatpush1.msra.mxu0 %v280
      %282 = vmatprep.subr.mxu0 0.0
      %v283 = vand.u32 %v182, 4294901760
      %v284 = vsub.f32 %v182, %v283
      %v285 = vand.u32 %v284, 4294901760
      %v286 = vsub.f32 %v284, %v285
      %v287 = vand.u32 %v286, 4294901760
      %288 = vmatpush1.msra.mxu0 %v287
      %289 = vmatprep.subr.mxu0 0.0
      %v290 = vand.u32 %v181, 4294901760
      %v291 = vsub.f32 %v181, %v290
      %v292 = vand.u32 %v291, 4294901760
      %v293 = vsub.f32 %v291, %v292
      %v294 = vand.u32 %v293, 4294901760
      %295 = vmatpush1.msra.mxu0 %v294
      %296 = vmatprep.subr.mxu0 0.0
      %v297 = vand.u32 %v180, 4294901760
      %v298 = vsub.f32 %v180, %v297
      %v299 = vand.u32 %v298, 4294901760
      %v300 = vsub.f32 %v298, %v299
      %v301 = vand.u32 %v300, 4294901760
      %302 = vmatpush1.msra.mxu0 %v301
      %303 = vmatprep.subr.mxu0 0.0
      %v304 = vand.u32 %v179, 4294901760
      %v305 = vsub.f32 %v179, %v304
      %v306 = vand.u32 %v305, 4294901760
      %v307 = vsub.f32 %v305, %v306
      %v308 = vand.u32 %v307, 4294901760
      %309 = vmatpush1.msra.mxu0 %v308
      %310 = vmatprep.subr.mxu0 0.0
      %v311 = vand.u32 %v178, 4294901760
      %v312 = vsub.f32 %v178, %v311
      %v313 = vand.u32 %v312, 4294901760
      %v314 = vsub.f32 %v312, %v313
      %v315 = vand.u32 %v314, 4294901760
      %316 = vmatpush1.msra.mxu0 %v315
      %317 = vmatprep.subr.mxu0 0.0
      %v318 = vand.u32 %v177, 4294901760
      %v319 = vsub.f32 %v177, %v318
      %v320 = vand.u32 %v319, 4294901760
      %v321 = vsub.f32 %v319, %v320
      %v322 = vand.u32 %v321, 4294901760
      %323 = vmatpush1.msra.mxu0 %v322
      %324 = vmatprep.subr.mxu0 0.0
      %v325 = vand.u32 %v176, 4294901760
      %v326 = vsub.f32 %v176, %v325
      %v327 = vand.u32 %v326, 4294901760
      %v328 = vsub.f32 %v326, %v327
      %v329 = vand.u32 %v328, 4294901760
      %330 = vmatpush1.msra.mxu0 %v329
      %331 = vmatprep.subr.mxu0 0.0
      %v332 = vand.u32 %v175, 4294901760
      %v333 = vsub.f32 %v175, %v332
      %v334 = vand.u32 %v333, 4294901760
      %v335 = vsub.f32 %v333, %v334
      %v336 = vand.u32 %v335, 4294901760
      %337 = vmatpush1.msra.mxu0 %v336
      %338 = vmatprep.subr.mxu0 0.0
      %v339 = vand.u32 %v174, 4294901760
      %v340 = vsub.f32 %v174, %v339
      %v341 = vand.u32 %v340, 4294901760
      %v342 = vsub.f32 %v340, %v341
      %v343 = vand.u32 %v342, 4294901760
      %344 = vmatpush1.msra.mxu0 %v343
      %345 = vmatprep.subr.mxu0 0.0
      %v346 = vand.u32 %v173, 4294901760
      %v347 = vsub.f32 %v173, %v346
      %v348 = vand.u32 %v347, 4294901760
      %v349 = vsub.f32 %v347, %v348
      %v350 = vand.u32 %v349, 4294901760
      %351 = vmatpush1.msra.mxu0 %v350
      %352 = vmatprep.subr.mxu0 0.0
      %v353 = vand.u32 %v172, 4294901760
      %v354 = vsub.f32 %v172, %v353
      %v355 = vand.u32 %v354, 4294901760
      %v356 = vsub.f32 %v354, %v355
      %v357 = vand.u32 %v356, 4294901760
      %358 = vmatpush1.msra.mxu0 %v357
      %359 = vmatprep.subr.mxu0 0.0
      %v360 = vand.u32 %v171, 4294901760
      %v361 = vsub.f32 %v171, %v360
      %v362 = vand.u32 %v361, 4294901760
      %v363 = vsub.f32 %v361, %v362
      %v364 = vand.u32 %v363, 4294901760
      %365 = vmatpush1.msra.mxu0 %v364
      %366 = vmatprep.subr.mxu0 0.0
      %v367 = vand.u32 %v170, 4294901760
      %v368 = vsub.f32 %v170, %v367
      %v369 = vand.u32 %v368, 4294901760
      %v370 = vsub.f32 %v368, %v369
      %v371 = vand.u32 %v370, 4294901760
      %372 = vmatpush1.msra.mxu0 %v371
      %373 = vmatprep.subr.mxu0 0.0
      %v374 = vand.u32 %v169, 4294901760
      %v375 = vsub.f32 %v169, %v374
      %v376 = vand.u32 %v375, 4294901760
      %v377 = vsub.f32 %v375, %v376
      %v378 = vand.u32 %v377, 4294901760
      %379 = vmatpush1.msra.mxu0 %v378
      %380 = vmatprep.subr.mxu0 0.0
      %v381 = vand.u32 %v168, 4294901760
      %v382 = vsub.f32 %v168, %v381
      %v383 = vand.u32 %v382, 4294901760
      %v384 = vsub.f32 %v382, %v383
      %v385 = vand.u32 %v384, 4294901760
      %386 = vmatpush1.msra.mxu0 %v385
      %387 = vmatprep.subr.mxu0 0.0
      %388 = vmatpush2.msra.mxu0 0.0
      %389 = vmatprep.subr.mxu0 0.0
      %390 = vmatpush2.msra.mxu0 0.0
      %391 = vmatprep.subr.mxu0 0.0
      %392 = vmatpush2.msra.mxu0 0.0
      %393 = vmatprep.subr.mxu0 0.0
      %394 = vmatpush2.msra.mxu0 0.0
      %395 = vmatprep.subr.mxu0 0.0
      %396 = vmatpush2.msra.mxu0 0.0
      %397 = vmatprep.subr.mxu0 0.0
      %398 = vmatpush2.msra.mxu0 0.0
      %399 = vmatprep.subr.mxu0 0.0
      %400 = vmatpush2.msra.mxu0 0.0
      %401 = vmatprep.subr.mxu0 0.0
      %402 = vmatpush2.msra.mxu0 0.0
      %403 = vmatprep.subr.mxu0 0.0
      %404 = vmatpush2.msra.mxu0 0.0
      %405 = vmatprep.subr.mxu0 0.0
      %406 = vmatpush2.msra.mxu0 0.0
      %407 = vmatprep.subr.mxu0 0.0
      %408 = vmatpush2.msra.mxu0 0.0
      %409 = vmatprep.subr.mxu0 0.0
      %410 = vmatpush2.msra.mxu0 0.0
      %411 = vmatprep.subr.mxu0 0.0
      %412 = vmatpush2.msra.mxu0 0.0
      %413 = vmatprep.subr.mxu0 0.0
      %414 = vmatpush2.msra.mxu0 0.0
      %415 = vmatprep.subr.mxu0 0.0
      %416 = vmatpush2.msra.mxu0 0.0
      %417 = vmatprep.subr.mxu0 0.0
      %418 = vmatpush2.msra.mxu0 0.0
      %419 = vmatprep.mubr.f32.mxu0 0.0
      %v420 = vand.u32 %v167, 4294901760
      %421 = vmatmul.mubr.f32.gmra.mxu0 %v420
      %v422 = vpop.f32.mrf.mxu0
      %v423 = vadd.f32 %v272, %v422
      %v424 = vpop.f32.mrf.mxu0
      %425 = vdwg.mxu0
      %426 = vmatprep.subr.mxu0 0.0
      %v427 = vand.u32 %v183, 4294901760
      %v428 = vsub.f32 %v183, %v427
      %429 = vmatpush1.msra.mxu0 %v428
      %430 = vmatprep.subr.mxu0 0.0
      %v431 = vand.u32 %v182, 4294901760
      %v432 = vsub.f32 %v182, %v431
      %433 = vmatpush1.msra.mxu0 %v432
      %434 = vmatprep.subr.mxu0 0.0
      %v435 = vand.u32 %v181, 4294901760
      %v436 = vsub.f32 %v181, %v435
      %437 = vmatpush1.msra.mxu0 %v436
      %438 = vmatprep.subr.mxu0 0.0
      %v439 = vand.u32 %v180, 4294901760
      %v440 = vsub.f32 %v180, %v439
      %441 = vmatpush1.msra.mxu0 %v440
      %442 = vmatprep.subr.mxu0 0.0
      %v443 = vand.u32 %v179, 4294901760
      %v444 = vsub.f32 %v179, %v443
      %445 = vmatpush1.msra.mxu0 %v444
      %446 = vmatprep.subr.mxu0 0.0
      %v447 = vand.u32 %v178, 4294901760
      %v448 = vsub.f32 %v178, %v447
      %449 = vmatpush1.msra.mxu0 %v448
      %450 = vmatprep.subr.mxu0 0.0
      %v451 = vand.u32 %v177, 4294901760
      %v452 = vsub.f32 %v177, %v451
      %453 = vmatpush1.msra.mxu0 %v452
      %454 = vmatprep.subr.mxu0 0.0
      %v455 = vand.u32 %v176, 4294901760
      %v456 = vsub.f32 %v176, %v455
      %457 = vmatpush1.msra.mxu0 %v456
      %458 = vmatprep.subr.mxu0 0.0
      %v459 = vand.u32 %v175, 4294901760
      %v460 = vsub.f32 %v175, %v459
      %461 = vmatpush1.msra.mxu0 %v460
      %462 = vmatprep.subr.mxu0 0.0
      %v463 = vand.u32 %v174, 4294901760
      %v464 = vsub.f32 %v174, %v463
      %465 = vmatpush1.msra.mxu0 %v464
      %466 = vmatprep.subr.mxu0 0.0
      %v467 = vand.u32 %v173, 4294901760
      %v468 = vsub.f32 %v173, %v467
      %469 = vmatpush1.msra.mxu0 %v468
      %470 = vmatprep.subr.mxu0 0.0
      %v471 = vand.u32 %v172, 4294901760
      %v472 = vsub.f32 %v172, %v471
      %473 = vmatpush1.msra.mxu0 %v472
      %474 = vmatprep.subr.mxu0 0.0
      %v475 = vand.u32 %v171, 4294901760
      %v476 = vsub.f32 %v171, %v475
      %477 = vmatpush1.msra.mxu0 %v476
      %478 = vmatprep.subr.mxu0 0.0
      %v479 = vand.u32 %v170, 4294901760
      %v480 = vsub.f32 %v170, %v479
      %481 = vmatpush1.msra.mxu0 %v480
      %482 = vmatprep.subr.mxu0 0.0
      %v483 = vand.u32 %v169, 4294901760
      %v484 = vsub.f32 %v169, %v483
      %485 = vmatpush1.msra.mxu0 %v484
      %486 = vmatprep.subr.mxu0 0.0
      %v487 = vand.u32 %v168, 4294901760
      %v488 = vsub.f32 %v168, %v487
      %489 = vmatpush1.msra.mxu0 %v488
      %490 = vmatprep.subr.mxu0 0.0
      %491 = vmatpush2.msra.mxu0 0.0
      %492 = vmatprep.subr.mxu0 0.0
      %493 = vmatpush2.msra.mxu0 0.0
      %494 = vmatprep.subr.mxu0 0.0
      %495 = vmatpush2.msra.mxu0 0.0
      %496 = vmatprep.subr.mxu0 0.0
      %497 = vmatpush2.msra.mxu0 0.0
      %498 = vmatprep.subr.mxu0 0.0
      %499 = vmatpush2.msra.mxu0 0.0
      %500 = vmatprep.subr.mxu0 0.0
      %501 = vmatpush2.msra.mxu0 0.0
      %502 = vmatprep.subr.mxu0 0.0
      %503 = vmatpush2.msra.mxu0 0.0
      %504 = vmatprep.subr.mxu0 0.0
      %505 = vmatpush2.msra.mxu0 0.0
      %506 = vmatprep.subr.mxu0 0.0
      %507 = vmatpush2.msra.mxu0 0.0
      %508 = vmatprep.subr.mxu0 0.0
      %509 = vmatpush2.msra.mxu0 0.0
      %510 = vmatprep.subr.mxu0 0.0
      %511 = vmatpush2.msra.mxu0 0.0
      %512 = vmatprep.subr.mxu0 0.0
      %513 = vmatpush2.msra.mxu0 0.0
      %514 = vmatprep.subr.mxu0 0.0
      %515 = vmatpush2.msra.mxu0 0.0
      %516 = vmatprep.subr.mxu0 0.0
      %517 = vmatpush2.msra.mxu0 0.0
      %518 = vmatprep.subr.mxu0 0.0
      %519 = vmatpush2.msra.mxu0 0.0
      %520 = vmatprep.subr.mxu0 0.0
      %521 = vmatpush2.msra.mxu0 0.0
      %522 = vmatprep.mubr.f32.mxu0 0.0
      %v523 = vand.u32 %v167, 4294901760
      %v524 = vsub.f32 %v167, %v523
      %525 = vmatmul.mubr.f32.gmra.mxu0 %v524
      %v526 = vpop.f32.mrf.mxu0
      %v527 = vadd.f32 %v423, %v526
      %v528 = vpop.f32.mrf.mxu0
      %529 = vdwg.mxu0
      %530 = vmatprep.subr.mxu0 0.0
      %v531 = vand.u32 %v183, 4294901760
      %532 = vmatpush1.msra.mxu0 %v531
      %533 = vmatprep.subr.mxu0 0.0
      %v534 = vand.u32 %v182, 4294901760
      %535 = vmatpush1.msra.mxu0 %v534
      %536 = vmatprep.subr.mxu0 0.0
      %v537 = vand.u32 %v181, 4294901760
      %538 = vmatpush1.msra.mxu0 %v537
      %539 = vmatprep.subr.mxu0 0.0
      %v540 = vand.u32 %v180, 4294901760
      %541 = vmatpush1.msra.mxu0 %v540
      %542 = vmatprep.subr.mxu0 0.0
      %v543 = vand.u32 %v179, 4294901760
      %544 = vmatpush1.msra.mxu0 %v543
      %545 = vmatprep.subr.mxu0 0.0
      %v546 = vand.u32 %v178, 4294901760
      %547 = vmatpush1.msra.mxu0 %v546
      %548 = vmatprep.subr.mxu0 0.0
      %v549 = vand.u32 %v177, 4294901760
      %550 = vmatpush1.msra.mxu0 %v549
      %551 = vmatprep.subr.mxu0 0.0
      %v552 = vand.u32 %v176, 4294901760
      %553 = vmatpush1.msra.mxu0 %v552
      %554 = vmatprep.subr.mxu0 0.0
      %v555 = vand.u32 %v175, 4294901760
      %556 = vmatpush1.msra.mxu0 %v555
      %557 = vmatprep.subr.mxu0 0.0
      %v558 = vand.u32 %v174, 4294901760
      %559 = vmatpush1.msra.mxu0 %v558
      %560 = vmatprep.subr.mxu0 0.0
      %v561 = vand.u32 %v173, 4294901760
      %562 = vmatpush1.msra.mxu0 %v561
      %563 = vmatprep.subr.mxu0 0.0
      %v564 = vand.u32 %v172, 4294901760
      %565 = vmatpush1.msra.mxu0 %v564
      %566 = vmatprep.subr.mxu0 0.0
      %v567 = vand.u32 %v171, 4294901760
      %568 = vmatpush1.msra.mxu0 %v567
      %569 = vmatprep.subr.mxu0 0.0
      %v570 = vand.u32 %v170, 4294901760
      %571 = vmatpush1.msra.mxu0 %v570
      %572 = vmatprep.subr.mxu0 0.0
      %v573 = vand.u32 %v169, 4294901760
      %574 = vmatpush1.msra.mxu0 %v573
      %575 = vmatprep.subr.mxu0 0.0
      %v576 = vand.u32 %v168, 4294901760
      %577 = vmatpush1.msra.mxu0 %v576
      %578 = vmatprep.subr.mxu0 0.0
      %579 = vmatpush2.msra.mxu0 0.0
      %580 = vmatprep.subr.mxu0 0.0
      %581 = vmatpush2.msra.mxu0 0.0
      %582 = vmatprep.subr.mxu0 0.0
      %583 = vmatpush2.msra.mxu0 0.0
      %584 = vmatprep.subr.mxu0 0.0
      %585 = vmatpush2.msra.mxu0 0.0
      %586 = vmatprep.subr.mxu0 0.0
      %587 = vmatpush2.msra.mxu0 0.0
      %588 = vmatprep.subr.mxu0 0.0
      %589 = vmatpush2.msra.mxu0 0.0
      %590 = vmatprep.subr.mxu0 0.0
      %591 = vmatpush2.msra.mxu0 0.0
      %592 = vmatprep.subr.mxu0 0.0
      %593 = vmatpush2.msra.mxu0 0.0
      %594 = vmatprep.subr.mxu0 0.0
      %595 = vmatpush2.msra.mxu0 0.0
      %596 = vmatprep.subr.mxu0 0.0
      %597 = vmatpush2.msra.mxu0 0.0
      %598 = vmatprep.subr.mxu0 0.0
      %599 = vmatpush2.msra.mxu0 0.0
      %600 = vmatprep.subr.mxu0 0.0
      %601 = vmatpush2.msra.mxu0 0.0
      %602 = vmatprep.subr.mxu0 0.0
      %603 = vmatpush2.msra.mxu0 0.0
      %604 = vmatprep.subr.mxu0 0.0
      %605 = vmatpush2.msra.mxu0 0.0
      %606 = vmatprep.subr.mxu0 0.0
      %607 = vmatpush2.msra.mxu0 0.0
      %608 = vmatprep.subr.mxu0 0.0
      %609 = vmatpush2.msra.mxu0 0.0
      %610 = vmatprep.mubr.f32.mxu0 0.0
      %v611 = vand.u32 %v167, 4294901760
      %v612 = vsub.f32 %v167, %v611
      %v613 = vand.u32 %v612, 4294901760
      %614 = vmatmul.mubr.f32.gmra.mxu0 %v613
      %v615 = vpop.f32.mrf.mxu0
      %v616 = vadd.f32 %v527, %v615
      %v617 = vpop.f32.mrf.mxu0
      %618 = vdwg.mxu0
      %619 = vmatprep.subr.mxu0 0.0
      %v620 = vand.u32 %v183, 4294901760
      %v621 = vsub.f32 %v183, %v620
      %v622 = vand.u32 %v621, 4294901760
      %623 = vmatpush1.msra.mxu0 %v622
      %624 = vmatprep.subr.mxu0 0.0
      %v625 = vand.u32 %v182, 4294901760
      %v626 = vsub.f32 %v182, %v625
      %v627 = vand.u32 %v626, 4294901760
      %628 = vmatpush1.msra.mxu0 %v627
      %629 = vmatprep.subr.mxu0 0.0
      %v630 = vand.u32 %v181, 4294901760
      %v631 = vsub.f32 %v181, %v630
      %v632 = vand.u32 %v631, 4294901760
      %633 = vmatpush1.msra.mxu0 %v632
      %634 = vmatprep.subr.mxu0 0.0
      %v635 = vand.u32 %v180, 4294901760
      %v636 = vsub.f32 %v180, %v635
      %v637 = vand.u32 %v636, 4294901760
      %638 = vmatpush1.msra.mxu0 %v637
      %639 = vmatprep.subr.mxu0 0.0
      %v640 = vand.u32 %v179, 4294901760
      %v641 = vsub.f32 %v179, %v640
      %v642 = vand.u32 %v641, 4294901760
      %643 = vmatpush1.msra.mxu0 %v642
      %644 = vmatprep.subr.mxu0 0.0
      %v645 = vand.u32 %v178, 4294901760
      %v646 = vsub.f32 %v178, %v645
      %v647 = vand.u32 %v646, 4294901760
      %648 = vmatpush1.msra.mxu0 %v647
      %649 = vmatprep.subr.mxu0 0.0
      %v650 = vand.u32 %v177, 4294901760
      %v651 = vsub.f32 %v177, %v650
      %v652 = vand.u32 %v651, 4294901760
      %653 = vmatpush1.msra.mxu0 %v652
      %654 = vmatprep.subr.mxu0 0.0
      %v655 = vand.u32 %v176, 4294901760
      %v656 = vsub.f32 %v176, %v655
      %v657 = vand.u32 %v656, 4294901760
      %658 = vmatpush1.msra.mxu0 %v657
      %659 = vmatprep.subr.mxu0 0.0
      %v660 = vand.u32 %v175, 4294901760
      %v661 = vsub.f32 %v175, %v660
      %v662 = vand.u32 %v661, 4294901760
      %663 = vmatpush1.msra.mxu0 %v662
      %664 = vmatprep.subr.mxu0 0.0
      %v665 = vand.u32 %v174, 4294901760
      %v666 = vsub.f32 %v174, %v665
      %v667 = vand.u32 %v666, 4294901760
      %668 = vmatpush1.msra.mxu0 %v667
      %669 = vmatprep.subr.mxu0 0.0
      %v670 = vand.u32 %v173, 4294901760
      %v671 = vsub.f32 %v173, %v670
      %v672 = vand.u32 %v671, 4294901760
      %673 = vmatpush1.msra.mxu0 %v672
      %674 = vmatprep.subr.mxu0 0.0
      %v675 = vand.u32 %v172, 4294901760
      %v676 = vsub.f32 %v172, %v675
      %v677 = vand.u32 %v676, 4294901760
      %678 = vmatpush1.msra.mxu0 %v677
      %679 = vmatprep.subr.mxu0 0.0
      %v680 = vand.u32 %v171, 4294901760
      %v681 = vsub.f32 %v171, %v680
      %v682 = vand.u32 %v681, 4294901760
      %683 = vmatpush1.msra.mxu0 %v682
      %684 = vmatprep.subr.mxu0 0.0
      %v685 = vand.u32 %v170, 4294901760
      %v686 = vsub.f32 %v170, %v685
      %v687 = vand.u32 %v686, 4294901760
      %688 = vmatpush1.msra.mxu0 %v687
      %689 = vmatprep.subr.mxu0 0.0
      %v690 = vand.u32 %v169, 4294901760
      %v691 = vsub.f32 %v169, %v690
      %v692 = vand.u32 %v691, 4294901760
      %693 = vmatpush1.msra.mxu0 %v692
      %694 = vmatprep.subr.mxu0 0.0
      %v695 = vand.u32 %v168, 4294901760
      %v696 = vsub.f32 %v168, %v695
      %v697 = vand.u32 %v696, 4294901760
      %698 = vmatpush1.msra.mxu0 %v697
      %699 = vmatprep.subr.mxu0 0.0
      %700 = vmatpush2.msra.mxu0 0.0
      %701 = vmatprep.subr.mxu0 0.0
      %702 = vmatpush2.msra.mxu0 0.0
      %703 = vmatprep.subr.mxu0 0.0
      %704 = vmatpush2.msra.mxu0 0.0
      %705 = vmatprep.subr.mxu0 0.0
      %706 = vmatpush2.msra.mxu0 0.0
      %707 = vmatprep.subr.mxu0 0.0
      %708 = vmatpush2.msra.mxu0 0.0
      %709 = vmatprep.subr.mxu0 0.0
      %710 = vmatpush2.msra.mxu0 0.0
      %711 = vmatprep.subr.mxu0 0.0
      %712 = vmatpush2.msra.mxu0 0.0
      %713 = vmatprep.subr.mxu0 0.0
      %714 = vmatpush2.msra.mxu0 0.0
      %715 = vmatprep.subr.mxu0 0.0
      %716 = vmatpush2.msra.mxu0 0.0
      %717 = vmatprep.subr.mxu0 0.0
      %718 = vmatpush2.msra.mxu0 0.0
      %719 = vmatprep.subr.mxu0 0.0
      %720 = vmatpush2.msra.mxu0 0.0
      %721 = vmatprep.subr.mxu0 0.0
      %722 = vmatpush2.msra.mxu0 0.0
      %723 = vmatprep.subr.mxu0 0.0
      %724 = vmatpush2.msra.mxu0 0.0
      %725 = vmatprep.subr.mxu0 0.0
      %726 = vmatpush2.msra.mxu0 0.0
      %727 = vmatprep.subr.mxu0 0.0
      %728 = vmatpush2.msra.mxu0 0.0
      %729 = vmatprep.subr.mxu0 0.0
      %730 = vmatpush2.msra.mxu0 0.0
      %731 = vmatprep.mubr.f32.mxu0 0.0
      %v732 = vand.u32 %v167, 4294901760
      %733 = vmatmul.mubr.f32.gmra.mxu0 %v732
      %v734 = vpop.f32.mrf.mxu0
      %v735 = vadd.f32 %v616, %v734
      %v736 = vpop.f32.mrf.mxu0
      %737 = vdwg.mxu0
      %738 = vmatprep.subr.mxu0 0.0
      %v739 = vand.u32 %v183, 4294901760
      %740 = vmatpush1.msra.mxu0 %v739
      %741 = vmatprep.subr.mxu0 0.0
      %v742 = vand.u32 %v182, 4294901760
      %743 = vmatpush1.msra.mxu0 %v742
      %744 = vmatprep.subr.mxu0 0.0
      %v745 = vand.u32 %v181, 4294901760
      %746 = vmatpush1.msra.mxu0 %v745
      %747 = vmatprep.subr.mxu0 0.0
      %v748 = vand.u32 %v180, 4294901760
      %749 = vmatpush1.msra.mxu0 %v748
      %750 = vmatprep.subr.mxu0 0.0
      %v751 = vand.u32 %v179, 4294901760
      %752 = vmatpush1.msra.mxu0 %v751
      %753 = vmatprep.subr.mxu0 0.0
      %v754 = vand.u32 %v178, 4294901760
      %755 = vmatpush1.msra.mxu0 %v754
      %756 = vmatprep.subr.mxu0 0.0
      %v757 = vand.u32 %v177, 4294901760
      %758 = vmatpush1.msra.mxu0 %v757
      %759 = vmatprep.subr.mxu0 0.0
      %v760 = vand.u32 %v176, 4294901760
      %761 = vmatpush1.msra.mxu0 %v760
      %762 = vmatprep.subr.mxu0 0.0
      %v763 = vand.u32 %v175, 4294901760
      %764 = vmatpush1.msra.mxu0 %v763
      %765 = vmatprep.subr.mxu0 0.0
      %v766 = vand.u32 %v174, 4294901760
      %767 = vmatpush1.msra.mxu0 %v766
      %768 = vmatprep.subr.mxu0 0.0
      %v769 = vand.u32 %v173, 4294901760
      %770 = vmatpush1.msra.mxu0 %v769
      %771 = vmatprep.subr.mxu0 0.0
      %v772 = vand.u32 %v172, 4294901760
      %773 = vmatpush1.msra.mxu0 %v772
      %774 = vmatprep.subr.mxu0 0.0
      %v775 = vand.u32 %v171, 4294901760
      %776 = vmatpush1.msra.mxu0 %v775
      %777 = vmatprep.subr.mxu0 0.0
      %v778 = vand.u32 %v170, 4294901760
      %779 = vmatpush1.msra.mxu0 %v778
      %780 = vmatprep.subr.mxu0 0.0
      %v781 = vand.u32 %v169, 4294901760
      %782 = vmatpush1.msra.mxu0 %v781
      %783 = vmatprep.subr.mxu0 0.0
      %v784 = vand.u32 %v168, 4294901760
      %785 = vmatpush1.msra.mxu0 %v784
      %786 = vmatprep.subr.mxu0 0.0
      %787 = vmatpush2.msra.mxu0 0.0
      %788 = vmatprep.subr.mxu0 0.0
      %789 = vmatpush2.msra.mxu0 0.0
      %790 = vmatprep.subr.mxu0 0.0
      %791 = vmatpush2.msra.mxu0 0.0
      %792 = vmatprep.subr.mxu0 0.0
      %793 = vmatpush2.msra.mxu0 0.0
      %794 = vmatprep.subr.mxu0 0.0
      %795 = vmatpush2.msra.mxu0 0.0
      %796 = vmatprep.subr.mxu0 0.0
      %797 = vmatpush2.msra.mxu0 0.0
      %798 = vmatprep.subr.mxu0 0.0
      %799 = vmatpush2.msra.mxu0 0.0
      %800 = vmatprep.subr.mxu0 0.0
      %801 = vmatpush2.msra.mxu0 0.0
      %802 = vmatprep.subr.mxu0 0.0
      %803 = vmatpush2.msra.mxu0 0.0
      %804 = vmatprep.subr.mxu0 0.0
      %805 = vmatpush2.msra.mxu0 0.0
      %806 = vmatprep.subr.mxu0 0.0
      %807 = vmatpush2.msra.mxu0 0.0
      %808 = vmatprep.subr.mxu0 0.0
      %809 = vmatpush2.msra.mxu0 0.0
      %810 = vmatprep.subr.mxu0 0.0
      %811 = vmatpush2.msra.mxu0 0.0
      %812 = vmatprep.subr.mxu0 0.0
      %813 = vmatpush2.msra.mxu0 0.0
      %814 = vmatprep.subr.mxu0 0.0
      %815 = vmatpush2.msra.mxu0 0.0
      %816 = vmatprep.subr.mxu0 0.0
      %817 = vmatpush2.msra.mxu0 0.0
      %818 = vmatprep.mubr.f32.mxu0 0.0
      %v819 = vand.u32 %v167, 4294901760
      %820 = vmatmul.mubr.f32.gmra.mxu0 %v819
      %v821 = vpop.f32.mrf.mxu0
      %v822 = vadd.f32 %v735, %v821
      %v823 = vpop.f32.mrf.mxu0
      %824 = vdwg.mxu0
      %v825 = vrsqrt.pop %v822
      %v826 = vmin.f32 %v825, 1e+12
      %v827 = vld [vmem:[%s2] sm:$0xff]
      %vm828 = vcmask 64512
      %v830 = vsel %vm828, %v826, 0
      %832 = vmatprep.subr.mxu0 0.0
      %833 = vmatpush1.msra.mxu0 0.0
      %834 = vmatprep.subr.mxu0 0.0
      %835 = vmatpush1.msra.mxu0 0.0
      %836 = vmatprep.subr.mxu0 0.0
      %837 = vmatpush1.msra.mxu0 0.0
      %838 = vmatprep.subr.mxu0 0.0
      %839 = vmatpush1.msra.mxu0 0.0
      %840 = vmatprep.subr.mxu0 0.0
      %841 = vmatpush1.msra.mxu0 0.0
      %842 = vmatprep.subr.mxu0 0.0
      %843 = vmatpush1.msra.mxu0 0.0
      %844 = vmatprep.subr.mxu0 0.0
      %845 = vmatpush1.msra.mxu0 0.0
      %846 = vmatprep.subr.mxu0 0.0
      %847 = vmatpush1.msra.mxu0 0.0
      %848 = vmatprep.subr.mxu0 0.0
      %849 = vmatpush1.msra.mxu0 0.0
      %850 = vmatprep.subr.mxu0 0.0
      %851 = vmatpush1.msra.mxu0 0.0
      %852 = vmatprep.subr.mxu0 0.0
      %853 = vmatpush1.msra.mxu0 0.0
      %854 = vmatprep.subr.mxu0 0.0
      %855 = vmatpush1.msra.mxu0 0.0
      %856 = vmatprep.subr.mxu0 0.0
      %857 = vmatpush1.msra.mxu0 0.0
      %858 = vmatprep.subr.mxu0 0.0
      %859 = vmatpush1.msra.mxu0 0.0
      %860 = vmatprep.subr.mxu0 0.0
      %861 = vmatpush1.msra.mxu0 0.0
      %862 = vmatprep.subr.mxu0 0.0
      %v863 = vand.u32 %v827, 4294901760
      %864 = vmatpush1.msra.mxu0 %v863
      %865 = vmatprep.subr.mxu0 0.0
      %866 = vmatpush2.msra.mxu0 0.0
      %867 = vmatprep.subr.mxu0 0.0
      %868 = vmatpush2.msra.mxu0 0.0
      %869 = vmatprep.subr.mxu0 0.0
      %870 = vmatpush2.msra.mxu0 0.0
      %871 = vmatprep.subr.mxu0 0.0
      %872 = vmatpush2.msra.mxu0 0.0
      %873 = vmatprep.subr.mxu0 0.0
      %874 = vmatpush2.msra.mxu0 0.0
      %875 = vmatprep.subr.mxu0 0.0
      %876 = vmatpush2.msra.mxu0 0.0
      %877 = vmatprep.subr.mxu0 0.0
      %878 = vmatpush2.msra.mxu0 0.0
      %879 = vmatprep.subr.mxu0 0.0
      %880 = vmatpush2.msra.mxu0 0.0
      %881 = vmatprep.subr.mxu0 0.0
      %882 = vmatpush2.msra.mxu0 0.0
      %883 = vmatprep.subr.mxu0 0.0
      %884 = vmatpush2.msra.mxu0 0.0
      %885 = vmatprep.subr.mxu0 0.0
      %886 = vmatpush2.msra.mxu0 0.0
      %887 = vmatprep.subr.mxu0 0.0
      %888 = vmatpush2.msra.mxu0 0.0
      %889 = vmatprep.subr.mxu0 0.0
      %890 = vmatpush2.msra.mxu0 0.0
      %891 = vmatprep.subr.mxu0 0.0
      %892 = vmatpush2.msra.mxu0 0.0
      %893 = vmatprep.subr.mxu0 0.0
      %894 = vmatpush2.msra.mxu0 0.0
      %895 = vmatprep.subr.mxu0 0.0
      %896 = vmatpush2.msra.mxu0 0.0
      %897 = vmatprep.mubr.f32.mxu0 0.0
      %v898 = vand.u32 %v830, 4294901760
      %v899 = vsub.f32 %v830, %v898
      %v900 = vand.u32 %v899, 4294901760
      %v901 = vsub.f32 %v899, %v900
      %v902 = vand.u32 %v901, 4294901760
      %903 = vmatmul.mubr.f32.gmra.mxu0 %v902
      %v904 = vpop.f32.mrf.mxu0
      %v905 = vadd.f32 0.0, %v904
      %v906 = vpop.f32.mrf.mxu0
      %907 = vdwg.mxu0
      %908 = vmatprep.subr.mxu0 0.0
      %909 = vmatpush1.msra.mxu0 0.0
      %910 = vmatprep.subr.mxu0 0.0
      %911 = vmatpush1.msra.mxu0 0.0
      %912 = vmatprep.subr.mxu0 0.0
      %913 = vmatpush1.msra.mxu0 0.0
      %914 = vmatprep.subr.mxu0 0.0
      %915 = vmatpush1.msra.mxu0 0.0
      %916 = vmatprep.subr.mxu0 0.0
      %917 = vmatpush1.msra.mxu0 0.0
      %918 = vmatprep.subr.mxu0 0.0
      %919 = vmatpush1.msra.mxu0 0.0
      %920 = vmatprep.subr.mxu0 0.0
      %921 = vmatpush1.msra.mxu0 0.0
      %922 = vmatprep.subr.mxu0 0.0
      %923 = vmatpush1.msra.mxu0 0.0
      %924 = vmatprep.subr.mxu0 0.0
      %925 = vmatpush1.msra.mxu0 0.0
      %926 = vmatprep.subr.mxu0 0.0
      %927 = vmatpush1.msra.mxu0 0.0
      %928 = vmatprep.subr.mxu0 0.0
      %929 = vmatpush1.msra.mxu0 0.0
      %930 = vmatprep.subr.mxu0 0.0
      %931 = vmatpush1.msra.mxu0 0.0
      %932 = vmatprep.subr.mxu0 0.0
      %933 = vmatpush1.msra.mxu0 0.0
      %934 = vmatprep.subr.mxu0 0.0
      %935 = vmatpush1.msra.mxu0 0.0
      %936 = vmatprep.subr.mxu0 0.0
      %937 = vmatpush1.msra.mxu0 0.0
      %938 = vmatprep.subr.mxu0 0.0
      %v939 = vand.u32 %v827, 4294901760
      %v940 = vsub.f32 %v827, %v939
      %v941 = vand.u32 %v940, 4294901760
      %v942 = vsub.f32 %v940, %v941
      %v943 = vand.u32 %v942, 4294901760
      %944 = vmatpush1.msra.mxu0 %v943
      %945 = vmatprep.subr.mxu0 0.0
      %946 = vmatpush2.msra.mxu0 0.0
      %947 = vmatprep.subr.mxu0 0.0
      %948 = vmatpush2.msra.mxu0 0.0
      %949 = vmatprep.subr.mxu0 0.0
      %950 = vmatpush2.msra.mxu0 0.0
      %951 = vmatprep.subr.mxu0 0.0
      %952 = vmatpush2.msra.mxu0 0.0
      %953 = vmatprep.subr.mxu0 0.0
      %954 = vmatpush2.msra.mxu0 0.0
      %955 = vmatprep.subr.mxu0 0.0
      %956 = vmatpush2.msra.mxu0 0.0
      %957 = vmatprep.subr.mxu0 0.0
      %958 = vmatpush2.msra.mxu0 0.0
      %959 = vmatprep.subr.mxu0 0.0
      %960 = vmatpush2.msra.mxu0 0.0
      %961 = vmatprep.subr.mxu0 0.0
      %962 = vmatpush2.msra.mxu0 0.0
      %963 = vmatprep.subr.mxu0 0.0
      %964 = vmatpush2.msra.mxu0 0.0
      %965 = vmatprep.subr.mxu0 0.0
      %966 = vmatpush2.msra.mxu0 0.0
      %967 = vmatprep.subr.mxu0 0.0
      %968 = vmatpush2.msra.mxu0 0.0
      %969 = vmatprep.subr.mxu0 0.0
      %970 = vmatpush2.msra.mxu0 0.0
      %971 = vmatprep.subr.mxu0 0.0
      %972 = vmatpush2.msra.mxu0 0.0
      %973 = vmatprep.subr.mxu0 0.0
      %974 = vmatpush2.msra.mxu0 0.0
      %975 = vmatprep.subr.mxu0 0.0
      %976 = vmatpush2.msra.mxu0 0.0
      %977 = vmatprep.mubr.f32.mxu0 0.0
      %v978 = vand.u32 %v830, 4294901760
      %979 = vmatmul.mubr.f32.gmra.mxu0 %v978
      %v980 = vpop.f32.mrf.mxu0
      %v981 = vadd.f32 %v905, %v980
      %v982 = vpop.f32.mrf.mxu0
      %983 = vdwg.mxu0
      %984 = vmatprep.subr.mxu0 0.0
      %985 = vmatpush1.msra.mxu0 0.0
      %986 = vmatprep.subr.mxu0 0.0
      %987 = vmatpush1.msra.mxu0 0.0
      %988 = vmatprep.subr.mxu0 0.0
      %989 = vmatpush1.msra.mxu0 0.0
      %990 = vmatprep.subr.mxu0 0.0
      %991 = vmatpush1.msra.mxu0 0.0
      %992 = vmatprep.subr.mxu0 0.0
      %993 = vmatpush1.msra.mxu0 0.0
      %994 = vmatprep.subr.mxu0 0.0
      %995 = vmatpush1.msra.mxu0 0.0
      %996 = vmatprep.subr.mxu0 0.0
      %997 = vmatpush1.msra.mxu0 0.0
      %998 = vmatprep.subr.mxu0 0.0
      %999 = vmatpush1.msra.mxu0 0.0
      %1000 = vmatprep.subr.mxu0 0.0
      %1001 = vmatpush1.msra.mxu0 0.0
      %1002 = vmatprep.subr.mxu0 0.0
      %1003 = vmatpush1.msra.mxu0 0.0
      %1004 = vmatprep.subr.mxu0 0.0
      %1005 = vmatpush1.msra.mxu0 0.0
      %1006 = vmatprep.subr.mxu0 0.0
      %1007 = vmatpush1.msra.mxu0 0.0
      %1008 = vmatprep.subr.mxu0 0.0
      %1009 = vmatpush1.msra.mxu0 0.0
      %1010 = vmatprep.subr.mxu0 0.0
      %1011 = vmatpush1.msra.mxu0 0.0
      %1012 = vmatprep.subr.mxu0 0.0
      %1013 = vmatpush1.msra.mxu0 0.0
      %1014 = vmatprep.subr.mxu0 0.0
      %v1015 = vand.u32 %v827, 4294901760
      %v1016 = vsub.f32 %v827, %v1015
      %1017 = vmatpush1.msra.mxu0 %v1016
      %1018 = vmatprep.subr.mxu0 0.0
      %1019 = vmatpush2.msra.mxu0 0.0
      %1020 = vmatprep.subr.mxu0 0.0
      %1021 = vmatpush2.msra.mxu0 0.0
      %1022 = vmatprep.subr.mxu0 0.0
      %1023 = vmatpush2.msra.mxu0 0.0
      %1024 = vmatprep.subr.mxu0 0.0
      %1025 = vmatpush2.msra.mxu0 0.0
      %1026 = vmatprep.subr.mxu0 0.0
      %1027 = vmatpush2.msra.mxu0 0.0
      %1028 = vmatprep.subr.mxu0 0.0
      %1029 = vmatpush2.msra.mxu0 0.0
      %1030 = vmatprep.subr.mxu0 0.0
      %1031 = vmatpush2.msra.mxu0 0.0
      %1032 = vmatprep.subr.mxu0 0.0
      %1033 = vmatpush2.msra.mxu0 0.0
      %1034 = vmatprep.subr.mxu0 0.0
      %1035 = vmatpush2.msra.mxu0 0.0
      %1036 = vmatprep.subr.mxu0 0.0
      %1037 = vmatpush2.msra.mxu0 0.0
      %1038 = vmatprep.subr.mxu0 0.0
      %1039 = vmatpush2.msra.mxu0 0.0
      %1040 = vmatprep.subr.mxu0 0.0
      %1041 = vmatpush2.msra.mxu0 0.0
      %1042 = vmatprep.subr.mxu0 0.0
      %1043 = vmatpush2.msra.mxu0 0.0
      %1044 = vmatprep.subr.mxu0 0.0
      %1045 = vmatpush2.msra.mxu0 0.0
      %1046 = vmatprep.subr.mxu0 0.0
      %1047 = vmatpush2.msra.mxu0 0.0
      %1048 = vmatprep.subr.mxu0 0.0
      %1049 = vmatpush2.msra.mxu0 0.0
      %1050 = vmatprep.mubr.f32.mxu0 0.0
      %v1051 = vand.u32 %v830, 4294901760
      %v1052 = vsub.f32 %v830, %v1051
      %1053 = vmatmul.mubr.f32.gmra.mxu0 %v1052
      %v1054 = vpop.f32.mrf.mxu0
      %v1055 = vadd.f32 %v981, %v1054
      %v1056 = vpop.f32.mrf.mxu0
      %1057 = vdwg.mxu0
      %1058 = vmatprep.subr.mxu0 0.0
      %1059 = vmatpush1.msra.mxu0 0.0
      %1060 = vmatprep.subr.mxu0 0.0
      %1061 = vmatpush1.msra.mxu0 0.0
      %1062 = vmatprep.subr.mxu0 0.0
      %1063 = vmatpush1.msra.mxu0 0.0
      %1064 = vmatprep.subr.mxu0 0.0
      %1065 = vmatpush1.msra.mxu0 0.0
      %1066 = vmatprep.subr.mxu0 0.0
      %1067 = vmatpush1.msra.mxu0 0.0
      %1068 = vmatprep.subr.mxu0 0.0
      %1069 = vmatpush1.msra.mxu0 0.0
      %1070 = vmatprep.subr.mxu0 0.0
      %1071 = vmatpush1.msra.mxu0 0.0
      %1072 = vmatprep.subr.mxu0 0.0
      %1073 = vmatpush1.msra.mxu0 0.0
      %1074 = vmatprep.subr.mxu0 0.0
      %1075 = vmatpush1.msra.mxu0 0.0
      %1076 = vmatprep.subr.mxu0 0.0
      %1077 = vmatpush1.msra.mxu0 0.0
      %1078 = vmatprep.subr.mxu0 0.0
      %1079 = vmatpush1.msra.mxu0 0.0
      %1080 = vmatprep.subr.mxu0 0.0
      %1081 = vmatpush1.msra.mxu0 0.0
      %1082 = vmatprep.subr.mxu0 0.0
      %1083 = vmatpush1.msra.mxu0 0.0
      %1084 = vmatprep.subr.mxu0 0.0
      %1085 = vmatpush1.msra.mxu0 0.0
      %1086 = vmatprep.subr.mxu0 0.0
      %1087 = vmatpush1.msra.mxu0 0.0
      %1088 = vmatprep.subr.mxu0 0.0
      %v1089 = vand.u32 %v827, 4294901760
      %1090 = vmatpush1.msra.mxu0 %v1089
      %1091 = vmatprep.subr.mxu0 0.0
      %1092 = vmatpush2.msra.mxu0 0.0
      %1093 = vmatprep.subr.mxu0 0.0
      %1094 = vmatpush2.msra.mxu0 0.0
      %1095 = vmatprep.subr.mxu0 0.0
      %1096 = vmatpush2.msra.mxu0 0.0
      %1097 = vmatprep.subr.mxu0 0.0
      %1098 = vmatpush2.msra.mxu0 0.0
      %1099 = vmatprep.subr.mxu0 0.0
      %1100 = vmatpush2.msra.mxu0 0.0
      %1101 = vmatprep.subr.mxu0 0.0
      %1102 = vmatpush2.msra.mxu0 0.0
      %1103 = vmatprep.subr.mxu0 0.0
      %1104 = vmatpush2.msra.mxu0 0.0
      %1105 = vmatprep.subr.mxu0 0.0
      %1106 = vmatpush2.msra.mxu0 0.0
      %1107 = vmatprep.subr.mxu0 0.0
      %1108 = vmatpush2.msra.mxu0 0.0
      %1109 = vmatprep.subr.mxu0 0.0
      %1110 = vmatpush2.msra.mxu0 0.0
      %1111 = vmatprep.subr.mxu0 0.0
      %1112 = vmatpush2.msra.mxu0 0.0
      %1113 = vmatprep.subr.mxu0 0.0
      %1114 = vmatpush2.msra.mxu0 0.0
      %1115 = vmatprep.subr.mxu0 0.0
      %1116 = vmatpush2.msra.mxu0 0.0
      %1117 = vmatprep.subr.mxu0 0.0
      %1118 = vmatpush2.msra.mxu0 0.0
      %1119 = vmatprep.subr.mxu0 0.0
      %1120 = vmatpush2.msra.mxu0 0.0
      %1121 = vmatprep.subr.mxu0 0.0
      %1122 = vmatpush2.msra.mxu0 0.0
      %1123 = vmatprep.mubr.f32.mxu0 0.0
      %v1124 = vand.u32 %v830, 4294901760
      %v1125 = vsub.f32 %v830, %v1124
      %v1126 = vand.u32 %v1125, 4294901760
      %1127 = vmatmul.mubr.f32.gmra.mxu0 %v1126
      %v1128 = vpop.f32.mrf.mxu0
      %v1129 = vadd.f32 %v1055, %v1128
      %v1130 = vpop.f32.mrf.mxu0
      %1131 = vdwg.mxu0
      %1132 = vmatprep.subr.mxu0 0.0
      %1133 = vmatpush1.msra.mxu0 0.0
      %1134 = vmatprep.subr.mxu0 0.0
      %1135 = vmatpush1.msra.mxu0 0.0
      %1136 = vmatprep.subr.mxu0 0.0
      %1137 = vmatpush1.msra.mxu0 0.0
      %1138 = vmatprep.subr.mxu0 0.0
      %1139 = vmatpush1.msra.mxu0 0.0
      %1140 = vmatprep.subr.mxu0 0.0
      %1141 = vmatpush1.msra.mxu0 0.0
      %1142 = vmatprep.subr.mxu0 0.0
      %1143 = vmatpush1.msra.mxu0 0.0
      %1144 = vmatprep.subr.mxu0 0.0
      %1145 = vmatpush1.msra.mxu0 0.0
      %1146 = vmatprep.subr.mxu0 0.0
      %1147 = vmatpush1.msra.mxu0 0.0
      %1148 = vmatprep.subr.mxu0 0.0
      %1149 = vmatpush1.msra.mxu0 0.0
      %1150 = vmatprep.subr.mxu0 0.0
      %1151 = vmatpush1.msra.mxu0 0.0
      %1152 = vmatprep.subr.mxu0 0.0
      %1153 = vmatpush1.msra.mxu0 0.0
      %1154 = vmatprep.subr.mxu0 0.0
      %1155 = vmatpush1.msra.mxu0 0.0
      %1156 = vmatprep.subr.mxu0 0.0
      %1157 = vmatpush1.msra.mxu0 0.0
      %1158 = vmatprep.subr.mxu0 0.0
      %1159 = vmatpush1.msra.mxu0 0.0
      %1160 = vmatprep.subr.mxu0 0.0
      %1161 = vmatpush1.msra.mxu0 0.0
      %1162 = vmatprep.subr.mxu0 0.0
      %v1163 = vand.u32 %v827, 4294901760
      %v1164 = vsub.f32 %v827, %v1163
      %v1165 = vand.u32 %v1164, 4294901760
      %1166 = vmatpush1.msra.mxu0 %v1165
      %1167 = vmatprep.subr.mxu0 0.0
      %1168 = vmatpush2.msra.mxu0 0.0
      %1169 = vmatprep.subr.mxu0 0.0
      %1170 = vmatpush2.msra.mxu0 0.0
      %1171 = vmatprep.subr.mxu0 0.0
      %1172 = vmatpush2.msra.mxu0 0.0
      %1173 = vmatprep.subr.mxu0 0.0
      %1174 = vmatpush2.msra.mxu0 0.0
      %1175 = vmatprep.subr.mxu0 0.0
      %1176 = vmatpush2.msra.mxu0 0.0
      %1177 = vmatprep.subr.mxu0 0.0
      %1178 = vmatpush2.msra.mxu0 0.0
      %1179 = vmatprep.subr.mxu0 0.0
      %1180 = vmatpush2.msra.mxu0 0.0
      %1181 = vmatprep.subr.mxu0 0.0
      %1182 = vmatpush2.msra.mxu0 0.0
      %1183 = vmatprep.subr.mxu0 0.0
      %1184 = vmatpush2.msra.mxu0 0.0
      %1185 = vmatprep.subr.mxu0 0.0
      %1186 = vmatpush2.msra.mxu0 0.0
      %1187 = vmatprep.subr.mxu0 0.0
      %1188 = vmatpush2.msra.mxu0 0.0
      %1189 = vmatprep.subr.mxu0 0.0
      %1190 = vmatpush2.msra.mxu0 0.0
      %1191 = vmatprep.subr.mxu0 0.0
      %1192 = vmatpush2.msra.mxu0 0.0
      %1193 = vmatprep.subr.mxu0 0.0
      %1194 = vmatpush2.msra.mxu0 0.0
      %1195 = vmatprep.subr.mxu0 0.0
      %1196 = vmatpush2.msra.mxu0 0.0
      %1197 = vmatprep.subr.mxu0 0.0
      %1198 = vmatpush2.msra.mxu0 0.0
      %1199 = vmatprep.mubr.f32.mxu0 0.0
      %v1200 = vand.u32 %v830, 4294901760
      %1201 = vmatmul.mubr.f32.gmra.mxu0 %v1200
      %v1202 = vpop.f32.mrf.mxu0
      %v1203 = vadd.f32 %v1129, %v1202
      %v1204 = vpop.f32.mrf.mxu0
      %1205 = vdwg.mxu0
      %1206 = vmatprep.subr.mxu0 0.0
      %1207 = vmatpush1.msra.mxu0 0.0
      %1208 = vmatprep.subr.mxu0 0.0
      %1209 = vmatpush1.msra.mxu0 0.0
      %1210 = vmatprep.subr.mxu0 0.0
      %1211 = vmatpush1.msra.mxu0 0.0
      %1212 = vmatprep.subr.mxu0 0.0
      %1213 = vmatpush1.msra.mxu0 0.0
      %1214 = vmatprep.subr.mxu0 0.0
      %1215 = vmatpush1.msra.mxu0 0.0
      %1216 = vmatprep.subr.mxu0 0.0
      %1217 = vmatpush1.msra.mxu0 0.0
      %1218 = vmatprep.subr.mxu0 0.0
      %1219 = vmatpush1.msra.mxu0 0.0
      %1220 = vmatprep.subr.mxu0 0.0
      %1221 = vmatpush1.msra.mxu0 0.0
      %1222 = vmatprep.subr.mxu0 0.0
      %1223 = vmatpush1.msra.mxu0 0.0
      %1224 = vmatprep.subr.mxu0 0.0
      %1225 = vmatpush1.msra.mxu0 0.0
      %1226 = vmatprep.subr.mxu0 0.0
      %1227 = vmatpush1.msra.mxu0 0.0
      %1228 = vmatprep.subr.mxu0 0.0
      %1229 = vmatpush1.msra.mxu0 0.0
      %1230 = vmatprep.subr.mxu0 0.0
      %1231 = vmatpush1.msra.mxu0 0.0
      %1232 = vmatprep.subr.mxu0 0.0
      %1233 = vmatpush1.msra.mxu0 0.0
      %1234 = vmatprep.subr.mxu0 0.0
      %1235 = vmatpush1.msra.mxu0 0.0
      %1236 = vmatprep.subr.mxu0 0.0
      %v1237 = vand.u32 %v827, 4294901760
      %1238 = vmatpush1.msra.mxu0 %v1237
      %1239 = vmatprep.subr.mxu0 0.0
      %1240 = vmatpush2.msra.mxu0 0.0
      %1241 = vmatprep.subr.mxu0 0.0
      %1242 = vmatpush2.msra.mxu0 0.0
      %1243 = vmatprep.subr.mxu0 0.0
      %1244 = vmatpush2.msra.mxu0 0.0
      %1245 = vmatprep.subr.mxu0 0.0
      %1246 = vmatpush2.msra.mxu0 0.0
      %1247 = vmatprep.subr.mxu0 0.0
      %1248 = vmatpush2.msra.mxu0 0.0
      %1249 = vmatprep.subr.mxu0 0.0
      %1250 = vmatpush2.msra.mxu0 0.0
      %1251 = vmatprep.subr.mxu0 0.0
      %1252 = vmatpush2.msra.mxu0 0.0
      %1253 = vmatprep.subr.mxu0 0.0
      %1254 = vmatpush2.msra.mxu0 0.0
      %1255 = vmatprep.subr.mxu0 0.0
      %1256 = vmatpush2.msra.mxu0 0.0
      %1257 = vmatprep.subr.mxu0 0.0
      %1258 = vmatpush2.msra.mxu0 0.0
      %1259 = vmatprep.subr.mxu0 0.0
      %1260 = vmatpush2.msra.mxu0 0.0
      %1261 = vmatprep.subr.mxu0 0.0
      %1262 = vmatpush2.msra.mxu0 0.0
      %1263 = vmatprep.subr.mxu0 0.0
      %1264 = vmatpush2.msra.mxu0 0.0
      %1265 = vmatprep.subr.mxu0 0.0
      %1266 = vmatpush2.msra.mxu0 0.0
      %1267 = vmatprep.subr.mxu0 0.0
      %1268 = vmatpush2.msra.mxu0 0.0
      %1269 = vmatprep.subr.mxu0 0.0
      %1270 = vmatpush2.msra.mxu0 0.0
      %1271 = vmatprep.mubr.f32.mxu0 0.0
      %v1272 = vand.u32 %v830, 4294901760
      %1273 = vmatmul.mubr.f32.gmra.mxu0 %v1272
      %v1274 = vpop.f32.mrf.mxu0
      %v1275 = vadd.f32 %v1203, %v1274
      %v1276 = vpop.f32.mrf.mxu0
      %1277 = vdwg.mxu0
      %v1278 = vmul.f32 %v166, %v1275
      %1279 = vst [vmem:[%s165] sm:$0xff] %v1278
      %p1280 = scmp.lt.s32.totalorder %s14, 1
      %s1281 = scalar_select %p1280, %s14, 1
      %s1282 = smul.addr %s1281, 8
      %s1283 = scalar_lea.vmem %s3, %s1282
      // Predicated region
      $region33: #{l2_normalization.1} parent=31 // pred_check
        %p1284 = pneg %p100
      $region34: #{l2_normalization.1} parent=31 // pred_check_branch
        %1286 = sbr.rel (%p1284) target = $region36
      $region35: #{l2_normalization.1} parent=31 // pred_region
        _
      $region36: #{l2_normalization.1} parent=31 // pred_fallthru
        _
    $region32: #{l2_normalization.1} parent=5 // pred_fallthru
      _
    %p1287 = scmp.le.s32.totalorder 2, %s9
    // Predicated region
    $region37: #{l2_normalization.1} parent=5 // pred_check
      %p1288 = pneg %p1287
    $region38: #{l2_normalization.1} parent=5 // pred_check_branch
      %1290 = sbr.rel (%p1288) target = $region40
    $region39: #{l2_normalization.1} parent=5 // pred_region
      %s1291 = ssub.s32 %s9, 2
      // Predicated region
      $region41: #{l2_normalization.1} parent=39 // pred_check
        %p1292 = pneg %p106
      $region42: #{l2_normalization.1} parent=39 // pred_check_branch
        %1294 = sbr.rel (%p1292) target = $region44
      $region43: #{l2_normalization.1} parent=39 // pred_region
        %p1295 = scmp.lt.s32.totalorder %s15, 1
        %s1296 = scalar_select %p1295, %s15, 1
        %s1297 = smul.addr %s1296, 8
        %s1298 = scalar_lea.vmem %s3, %s1297
      $region44: #{l2_normalization.1} parent=39 // pred_fallthru
        _
    $region40: #{l2_normalization.1} parent=5 // pred_fallthru
      _
  $region6: #{l2_normalization.1} parent=0 // loop_footer
    %s13 = sadd.s32 1, %s9
  $region7: #{l2_normalization.1} parent=0 // loop_footer_branch
    %8 = sbr.rel target = $region3
  $region8: #{l2_normalization.1} parent=0 // loop_exit
    _

</llo_original>
